<compile_context>
chip_gen: v5e
topology: v5e:2x2
jax: 0.10.0
libtpu: 0.0.40
codegen_flags: <defaults>
</compile_context>

<pallas_src>
import functools

import jax
import jax.numpy as jnp
from jax import lax
from jax.experimental import pallas as pl
from jax.experimental.pallas import tpu as pltpu


# ------------------------------- helpers ------------------------------------


def _round_up(x, q):
    return ((x + q - 1) // q) * q


def _pad2d(x, rows, cols):
    return jnp.pad(x, ((0, rows - x.shape[0]), (0, cols - x.shape[1])))


def _tile_plan_n(n):
    """Row/K tiles for the (n x n) A_hat stream; pad N so tiles never collapse."""
    n128 = _round_up(n, 128)
    if n128 <= 512:
        n_pad = n128
        tm = tk = n128
    else:
        n_pad = _round_up(n128, 512)
        tm = 512
        tk = 1024 if n_pad % 1024 == 0 else 512
    return n_pad, tm, tk


def _vmem_limit_bytes():
    """~3/4 of physical VMEM (96 MiB on v5e/v6e, 48 MiB on v7x)."""
    try:
        cap = pltpu.get_tpu_info().vmem_capacity_bytes
    except Exception:
        cap = 64 * 1024 * 1024
    return min(int(cap * 3 // 4), 100 * 1024 * 1024)


# ----------------------------- Pallas kernels -------------------------------


def xw1_kernel(x_ref, w1_ref, o_ref):
    """XW1 tile = X_tile @ W1 (no bias; bias folded into the aggregation)."""
    o_ref[...] = jnp.dot(x_ref[...], w1_ref[...],
                         preferred_element_type=jnp.float32).astype(o_ref.dtype)


def aggregate_bias_relu_kernel(a_ref, xw1_ref, b1_ref, o_ref, acc_ref, *, tk):
    """H_tile = relu(A_hat_tile-row @ XW1 + b1).  Grid = (row tiles, K tiles).

    XW1 is fully VMEM-resident (constant-index BlockSpec), so only the A_hat
    row tiles stream from HBM.
    """
    k = pl.program_id(1)

    @pl.when(k == 0)
    def _():
        acc_ref[...] = jnp.zeros_like(acc_ref)

    start = pl.multiple_of(k * tk, tk)
    acc_ref[...] += jnp.dot(a_ref[...], xw1_ref[pl.ds(start, tk), :],
                            preferred_element_type=jnp.float32)

    @pl.when(k == pl.num_programs(1) - 1)
    def _():
        o_ref[...] = jnp.maximum(acc_ref[...] + b1_ref[...], 0.0).astype(o_ref.dtype)


def fused_layer2_cls_combine_kernel(a_ref, h_ref, w2_ref, b2_ref,
                                    xb_ref, wcls_ref, bcls_ref,
                                    o_ref, acc_ref, *, nb_class, m):
    """Reassociated fused epilogue.  Grid = (K tiles over N,).

      acc_AH += A_hat[:B]_tile @ H_tile                (fp32, (b_pad, h_pad))
      finalize:
        gcn_logit = acc_AH @ W2 + b2
        cls_logit = X[:B] @ W_cls + b_cls
        pred      = log((softmax(gcn)+1e-10)*m + softmax(cls)*(1-m))
    """
    k = pl.program_id(0)

    @pl.when(k == 0)
    def _():
        acc_ref[...] = jnp.zeros_like(acc_ref)

    acc_ref[...] += jnp.dot(a_ref[...], h_ref[...],
                            preferred_element_type=jnp.float32)

    @pl.when(k == pl.num_programs(0) - 1)
    def _():
        neg = jnp.float32(-1e30)
        col = lax.broadcasted_iota(jnp.int32, o_ref.shape, 1)
        valid = col < nb_class            # mask out lane-padding columns

        gcn_logit = jnp.dot(acc_ref[...].astype(jnp.bfloat16), w2_ref[...],
                            preferred_element_type=jnp.float32) + b2_ref[...]
        gcn_logit = jnp.where(valid, gcn_logit, neg)

        cls_logit = jnp.dot(xb_ref[...], wcls_ref[...],
                            preferred_element_type=jnp.float32) + bcls_ref[...]
        cls_logit = jnp.where(valid, cls_logit, neg)

        def _softmax(z):
            z = z - jnp.max(z, axis=1, keepdims=True)
            e = jnp.exp(z)
            return e / jnp.sum(e, axis=1, keepdims=True)   # exact; runs once

        p = (_softmax(gcn_logit) + 1e-10) * m + _softmax(cls_logit) * (1.0 - m)
        o_ref[...] = jnp.log(p).astype(o_ref.dtype)


# ----------------------------- Pallas wrappers -------------------------------


def compute_xw1(x_p, w1_p, *, tm):
    n_pad, f_pad = x_p.shape
    h_pad = w1_p.shape[1]
    return pl.pallas_call(
        xw1_kernel,
        out_shape=jax.ShapeDtypeStruct((n_pad, h_pad), jnp.bfloat16),
        grid_spec=pltpu.PrefetchScalarGridSpec(
            num_scalar_prefetch=0,
            grid=(n_pad // tm,),
            in_specs=[
                pl.BlockSpec((tm, f_pad), lambda i: (i, 0)),
                pl.BlockSpec((f_pad, h_pad), lambda i: (0, 0)),
            ],
            out_specs=pl.BlockSpec((tm, h_pad), lambda i: (i, 0)),
        ),
        compiler_params=pltpu.CompilerParams(
            dimension_semantics=("parallel",),
            vmem_limit_bytes=_vmem_limit_bytes(),
        ),
    )(x_p, w1_p)


def aggregate_bias_relu(a_hat_p, xw1, b1_p, *, tm, tk):
    n_pad = a_hat_p.shape[0]
    h_pad = xw1.shape[1]
    return pl.pallas_call(
        functools.partial(aggregate_bias_relu_kernel, tk=tk),
        out_shape=jax.ShapeDtypeStruct((n_pad, h_pad), jnp.bfloat16),
        grid_spec=pltpu.PrefetchScalarGridSpec(
            num_scalar_prefetch=0,
            grid=(n_pad // tm, n_pad // tk),
            in_specs=[
                pl.BlockSpec((tm, tk), lambda i, k: (i, k)),        # A_hat tiles (streamed)
                pl.BlockSpec((n_pad, h_pad), lambda i, k: (0, 0)),  # XW1 (VMEM resident)
                pl.BlockSpec((1, h_pad), lambda i, k: (0, 0)),      # b1
            ],
            out_specs=pl.BlockSpec((tm, h_pad), lambda i, k: (i, 0)),
            scratch_shapes=[pltpu.VMEM((tm, h_pad), jnp.float32)],
        ),
        compiler_params=pltpu.CompilerParams(
            dimension_semantics=("parallel", "arbitrary"),
            vmem_limit_bytes=_vmem_limit_bytes(),
        ),
    )(a_hat_p, xw1, b1_p)


def fused_layer2_cls_combine(a_hat_p, h, w2_p, b2_p, x_p, wcls_p, bcls_p, *,
                             b_pad, nb_class, m, tk):
    # TODO(synk): if batch_size grows, add a 'parallel' row-tile axis over b_pad
    #             so both v7x TensorCores share the fused epilogue.
    n_pad = a_hat_p.shape[0]
    h_pad = h.shape[1]
    c_pad = w2_p.shape[1]
    f_pad = x_p.shape[1]
    return pl.pallas_call(
        functools.partial(fused_layer2_cls_combine_kernel,
                          nb_class=nb_class, m=float(m)),
        out_shape=jax.ShapeDtypeStruct((b_pad, c_pad), jnp.float32),
        grid_spec=pltpu.PrefetchScalarGridSpec(
            num_scalar_prefetch=0,
            grid=(n_pad // tk,),
            in_specs=[
                pl.BlockSpec((b_pad, tk), lambda k: (0, k)),      # A_hat[:B] via index_map
                pl.BlockSpec((tk, h_pad), lambda k: (k, 0)),      # H tiles (streamed)
                pl.BlockSpec((h_pad, c_pad), lambda k: (0, 0)),   # W2
                pl.BlockSpec((1, c_pad), lambda k: (0, 0)),       # b2
                pl.BlockSpec((b_pad, f_pad), lambda k: (0, 0)),   # X[:B] via index_map
                pl.BlockSpec((f_pad, c_pad), lambda k: (0, 0)),   # W_cls
                pl.BlockSpec((1, c_pad), lambda k: (0, 0)),       # b_cls
            ],
            out_specs=pl.BlockSpec((b_pad, c_pad), lambda k: (0, 0)),
            scratch_shapes=[pltpu.VMEM((b_pad, h_pad), jnp.float32)],
        ),
        compiler_params=pltpu.CompilerParams(
            dimension_semantics=("arbitrary",),
            vmem_limit_bytes=_vmem_limit_bytes(),
        ),
    )(a_hat_p, h, w2_p, b2_p, x_p, wcls_p, bcls_p)


# ------------------------------ Glue (plain JAX) -----------------------------


def build_normalized_adjacency(edge_index, edge_weight, num_nodes):
    """Dense GCN-normalized adjacency: A_hat = D^{-1/2} (A + I) D^{-1/2}."""
    src = edge_index[0]
    dst = edge_index[1]
    a = jnp.zeros((num_nodes, num_nodes), jnp.float32).at[dst, src].add(edge_weight)
    a = a + jnp.eye(num_nodes, dtype=jnp.float32)  # self-loops (weight 1)
    deg = jnp.sum(a, axis=1)
    dinv = jnp.where(deg > 0, 1.0 / jnp.sqrt(deg), 0.0)
    return dinv[:, None] * a * dinv[None, :]


def bert_gcn_forward(graph_feats, edge_index, edge_weight, params, batch_size,
                     m, nb_class):
    """Eval-mode Bert_GCN forward (single_label_classification)."""
    n, f = graph_feats.shape
    h_dim = params["w1"].shape[1]

    n_pad, tm, tk = _tile_plan_n(n)
    f_pad = _round_up(f, 128)
    h_pad = _round_up(h_dim, 128)
    c_pad = _round_up(nb_class, 128)
    b_pad = _round_up(batch_size, 128)        # lane/sublane-friendly batch rows

    a_hat = build_normalized_adjacency(edge_index, edge_weight, n)
    # TODO(synk): per-generation narrowing of A_hat (fp8 on v7x, int8 on v5e/v6e)
    #             would roughly halve the dominant HBM stream.
    a_hat_p = _pad2d(a_hat, n_pad, n_pad).astype(jnp.bfloat16)
    x_p = _pad2d(graph_feats, n_pad, f_pad).astype(jnp.bfloat16)
    w1_p = _pad2d(params["w1"], f_pad, h_pad).astype(jnp.bfloat16)
    b1_p = _pad2d(params["b1"], 1, h_pad).astype(jnp.float32)
    w2_p = _pad2d(params["w2"], h_pad, c_pad).astype(jnp.bfloat16)
    b2_p = _pad2d(params["b2"], 1, c_pad).astype(jnp.float32)
    wcls_p = _pad2d(params["w_cls"], f_pad, c_pad).astype(jnp.bfloat16)
    bcls_p = _pad2d(params["b_cls"], 1, c_pad).astype(jnp.float32)

    # Text_GCN layer 1:  H = relu(A_hat @ (X @ W1) + b1)  (dropout is a no-op in eval).
    xw1 = compute_xw1(x_p, w1_p, tm=tm)
    h = aggregate_bias_relu(a_hat_p, xw1, b1_p, tm=tm, tk=tk)

    # Layer 2 only for the batch rows, fused with the BERT classifier head and
    # the softmax/log interpolation (batch rows selected via BlockSpec).
    pred_pad = fused_layer2_cls_combine(a_hat_p, h, w2_p, b2_p, x_p, wcls_p,
                                        bcls_p, b_pad=b_pad, nb_class=nb_class,
                                        m=m, tk=tk)

    pred = pred_pad[:batch_size, :nb_class]
    cls_feats = graph_feats[:batch_size]
    return pred, cls_feats


def _reference_forward(graph_feats, edge_index, edge_weight, params,
                       batch_size, m):
    """Pure-JAX fp32 reference (for a loose sanity check)."""
    a = build_normalized_adjacency(edge_index, edge_weight, graph_feats.shape[0])
    cls_logit = graph_feats[:batch_size] @ params["w_cls"] + params["b_cls"]
    h = jnp.maximum(a @ (graph_feats @ params["w1"]) + params["b1"], 0.0)
    gcn_logit = (a @ (h @ params["w2"]) + params["b2"])[:batch_size]
    sg = jax.nn.softmax(gcn_logit, axis=1)
    sc = jax.nn.softmax(cls_logit, axis=1)
    return jnp.log((sg + 1e-10) * m + sc * (1.0 - m))


# ------------------------------------ main -----------------------------------


if __name__ == "__main__":
    NUM_NODES = 16      # graph nodes (docs + words)
    NUM_FEATURES = 32   # bert hidden size (num_features)
    HIDDEN = 16         # gcn hiddenChannels
    NB_CLASS = 8        # nb_class
    BATCH = 4           # batch_size (document nodes)
    NUM_EDGES = 48
    M = 0.7             # interpolation coefficient m

    key = jax.random.PRNGKey(0)
    k = jax.random.split(key, 8)

    graph_feats = jax.random.normal(k[0], (NUM_NODES, NUM_FEATURES), jnp.float32)
    edge_index = jax.random.randint(k[1], (2, NUM_EDGES), 0, NUM_NODES, jnp.int32)
    edge_weight = jax.random.uniform(k[2], (NUM_EDGES,), jnp.float32, 0.1, 1.0)

    params = {
        # bert_model.classifier: Linear(num_features -> nb_class)
        "w_cls": jax.random.normal(k[3], (NUM_FEATURES, NB_CLASS), jnp.float32) * 0.1,
        "b_cls": jnp.zeros((1, NB_CLASS), jnp.float32),
        # Text_GCN conv1: (num_features -> hiddenChannels)
        "w1": jax.random.normal(k[4], (NUM_FEATURES, HIDDEN), jnp.float32) * 0.1,
        "b1": jnp.zeros((1, HIDDEN), jnp.float32),
        # Text_GCN conv2: (hiddenChannels -> nb_class)
        "w2": jax.random.normal(k[5], (HIDDEN, NB_CLASS), jnp.float32) * 0.1,
        "b2": jnp.zeros((1, NB_CLASS), jnp.float32),
    }

    pred, cls_feats = bert_gcn_forward(
        graph_feats, edge_index, edge_weight, params, BATCH, M, NB_CLASS
    )
    jax.block_until_ready(pred)
    jax.block_until_ready(cls_feats)

    assert pred.shape == (BATCH, NB_CLASS)
    assert cls_feats.shape == (BATCH, NUM_FEATURES)
    assert bool(jnp.all(jnp.isfinite(pred)))

    # Loose numerical sanity check vs. fp32 reference (kernels use bf16 matmuls).
    ref = _reference_forward(graph_feats, edge_index, edge_weight, params, BATCH, M)
    max_err = float(jnp.max(jnp.abs(pred - ref)))
    assert max_err < 0.1, f"max abs err {max_err}"

    print("KERNEL_OK")
</pallas_src>

<mosaic_0001>
module attributes {stable_mosaic.version = 11 : i64} {
  func.func @xw1_kernel(%arg0: i32, %arg1: memref<128x128xbf16, #tpu.memory_space<vmem>>, %arg2: memref<128x128xbf16, #tpu.memory_space<vmem>>, %arg3: memref<128x128xbf16, #tpu.memory_space<vmem>>) attributes {dimension_semantics = [#tpu.dimension_semantics<parallel>], iteration_bounds = array<i64: 1>, scalar_prefetch = 0 : i64, scratch_operands = 0 : i64, tpu.core_type = #tpu.core_type<tc>, window_params = [{transform_indices = @transform_0, window_bounds = array<i64: 128, 128>}, {pipeline_mode = #tpu.pipeline_mode<synchronous>, transform_indices = @transform_1, window_bounds = array<i64: 128, 128>}, {transform_indices = @transform_2, window_bounds = array<i64: 128, 128>}]} {
    %c0 = arith.constant 0 : index
    %c0_0 = arith.constant 0 : index
    %0 = vector.load %arg1[%c0, %c0_0] : memref<128x128xbf16, #tpu.memory_space<vmem>>, vector<128x128xbf16>
    %c0_1 = arith.constant 0 : index
    %c0_2 = arith.constant 0 : index
    %1 = vector.load %arg2[%c0_1, %c0_2] : memref<128x128xbf16, #tpu.memory_space<vmem>>, vector<128x128xbf16>
    %cst = arith.constant dense<0.000000e+00> : vector<128x128xf32>
    %2 = tpu.matmul %0, %1, %cst {dimension_numbers = #tpu.dot_dimension_numbers<[1], [0], [0], [1], [0, 0, 1, 1], [], []>} : vector<128x128xbf16>, vector<128x128xbf16>, vector<128x128xf32> -> vector<128x128xf32>
    %3 = arith.truncf %2 : vector<128x128xf32> to vector<128x128xbf16>
    %c0_3 = arith.constant 0 : index
    %c0_4 = arith.constant 0 : index
    %4 = vector.load %arg3[%c0_3, %c0_4] : memref<128x128xbf16, #tpu.memory_space<vmem>>, vector<128x128xbf16>
    tpu.vector_store %arg3[%c0_3, %c0_4], %3 {strides = array<i32>} : memref<128x128xbf16, #tpu.memory_space<vmem>>, vector<128x128xbf16>,
    return
  }
  func.func @transform_0(%arg0: i32) -> (i32, i32) {
    %c0_i32 = arith.constant 0 : i32
    %c0_i32_0 = arith.constant 0 : i32
    return %arg0, %c0_i32 : i32, i32
  }
  func.func @transform_1(%arg0: i32) -> (i32, i32) {
    %c0_i32 = arith.constant 0 : i32
    %c0_i32_0 = arith.constant 0 : i32
    %c0_i32_1 = arith.constant 0 : i32
    return %c0_i32, %c0_i32_0 : i32, i32
  }
  func.func @transform_2(%arg0: i32) -> (i32, i32) {
    %c0_i32 = arith.constant 0 : i32
    %c0_i32_0 = arith.constant 0 : i32
    return %arg0, %c0_i32 : i32, i32
  }
}

</mosaic_0001>

<llo_original>
// kernel: tpu_custom_call.1
$region0: #{tpu_custom_call.1}
  #allocation0 [shape = 'u32[]', space=smem, size = 0x4, offset = 0x4, fixed_abs, tag = 'smem constant byte address 0x4 - core index']
  #allocation1 [shape = 'u32[72,128]{1,0:T(1,128)}', space=vmem, size = 0x9000, scoped, tag = 'internal scratch']
  %s0 = inlined_call_operand.hbm [shape: bf16[128,128], index: 0, kind: input, shape index: {}]
  %s1 = inlined_call_operand.hbm [shape: bf16[128,128], index: 1, kind: input, shape index: {}]
  %s2 = inlined_call_operand.hbm [shape: bf16[128,128], index: 2, kind: output, shape index: {}]
  %s3 = sld [smem:[#allocation0]]
  $region26: #{tpu_custom_call.1} parent=0
    _
  %s5 = ssub.s32 1, %s3
  %s6 = scalar_select 0, %s5, %s3
  $region1: #{tpu_custom_call.1} parent=0
    #allocation2 [shape = 'u8[32768]{0}', space=vmem, size = 0x8000, scoped, tag = 'input window, operand 0, single buffered']
    #allocation3 [shape = 's32[1]{0}', space=sflag, size = 0x4, scoped, tag = 'scoped memory for tpu_custom_call.1']
    #allocation4 [shape = 's32[1]{0}', space=sflag, size = 0x4, scoped, tag = 'scoped memory for tpu_custom_call.1']
    #allocation5 [shape = 'u8[32768]{0}', space=vmem, size = 0x8000, scoped, tag = 'input window, operand 1, single buffered']
    #allocation6 [shape = 's32[1]{0}', space=sflag, size = 0x4, scoped, tag = 'scoped memory for tpu_custom_call.1']
    #allocation7 [shape = 'u8[32768]{0}', space=vmem, size = 0x8000, scoped, tag = 'output window, operand 0, single buffered']
    %7 = vsyncpa [#allocation3], 0
    %8 = vsyncpa [#allocation6], 0
    %9 = vsyncpa [#allocation4], 0
    // Predicated region
    $region2: #{tpu_custom_call.1} parent=1 // pred_check
      _
    $region3: #{tpu_custom_call.1} parent=1 // pred_check_branch
      %11 = sbr.rel (0) target = $region5
    $region4: #{tpu_custom_call.1} parent=1 // pred_region
      %13 = vsyncadd [#allocation3], 0
      %s14 = sshll.u32 %s0, 4
      %s15 = int_to_ptr.hbm [resolvable:$true] %s14
      %s16 = sshll.u32 [#allocation2], 4
      %s17 = int_to_ptr.vmem [resolvable:$true] %s16
      %22 = dma.hbm_to_vmem [thread:$0]  %s15, 1024, %s17, [#allocation3], 64, 64, 4
    $region5: #{tpu_custom_call.1} parent=1 // pred_fallthru
      _
    // Predicated region
    $region6: #{tpu_custom_call.1} parent=1 // pred_check
      _
    $region7: #{tpu_custom_call.1} parent=1 // pred_check_branch
      %24 = sbr.rel (0) target = $region9
    $region8: #{tpu_custom_call.1} parent=1 // pred_region
      %26 = vsyncadd [#allocation6], 0
      %s27 = sshll.u32 %s1, 4
      %s28 = int_to_ptr.hbm [resolvable:$true] %s27
      %s29 = sshll.u32 [#allocation5], 4
      %s30 = int_to_ptr.vmem [resolvable:$true] %s29
      %35 = dma.hbm_to_vmem [thread:$0]  %s28, 1024, %s30, [#allocation6], 64, 64, 4
    $region9: #{tpu_custom_call.1} parent=1 // pred_fallthru
      _
    // Predicated region
    $region10: #{tpu_custom_call.1} parent=1 // pred_check
      _
    $region11: #{tpu_custom_call.1} parent=1 // pred_check_branch
      %37 = sbr.rel (0) target = $region13
    $region12: #{tpu_custom_call.1} parent=1 // pred_region
      %39 = dma.done [#allocation3], 1024
    $region13: #{tpu_custom_call.1} parent=1 // pred_fallthru
      _
    // Predicated region
    $region14: #{tpu_custom_call.1} parent=1 // pred_check
      _
    $region15: #{tpu_custom_call.1} parent=1 // pred_check_branch
      %41 = sbr.rel (0) target = $region17
    $region16: #{tpu_custom_call.1} parent=1 // pred_region
      %43 = dma.done [#allocation6], 1024
    $region17: #{tpu_custom_call.1} parent=1 // pred_fallthru
      _
    %v44 = vld [vmem:[#allocation2] sm:$0xf]
    %v45 = vld [vmem:[#allocation2 + $0x4] sm:$0xf]
    %v46 = vld [vmem:[#allocation2 + $0x8] sm:$0xf]
    %v47 = vld [vmem:[#allocation2 + $0xc] sm:$0xf]
    %v48 = vld [vmem:[#allocation2 + $0x10] sm:$0xf]
    %v49 = vld [vmem:[#allocation2 + $0x14] sm:$0xf]
    %v50 = vld [vmem:[#allocation2 + $0x18] sm:$0xf]
    %v51 = vld [vmem:[#allocation2 + $0x1c] sm:$0xf]
    %v52 = vld [vmem:[#allocation2 + $0x20] sm:$0xf]
    %v53 = vld [vmem:[#allocation2 + $0x24] sm:$0xf]
    %v54 = vld [vmem:[#allocation2 + $0x28] sm:$0xf]
    %v55 = vld [vmem:[#allocation2 + $0x2c] sm:$0xf]
    %v56 = vld [vmem:[#allocation2 + $0x30] sm:$0xf]
    %v57 = vld [vmem:[#allocation2 + $0x34] sm:$0xf]
    %v58 = vld [vmem:[#allocation2 + $0x38] sm:$0xf]
    %v59 = vld [vmem:[#allocation2 + $0x3c] sm:$0xf]
    %v60 = vld [vmem:[#allocation5] sm:$0xf]
    %v61 = vld [vmem:[#allocation5 + $0x4] sm:$0xf]
    %v62 = vld [vmem:[#allocation5 + $0x8] sm:$0xf]
    %v63 = vld [vmem:[#allocation5 + $0xc] sm:$0xf]
    %v64 = vld [vmem:[#allocation5 + $0x10] sm:$0xf]
    %v65 = vld [vmem:[#allocation5 + $0x14] sm:$0xf]
    %v66 = vld [vmem:[#allocation5 + $0x18] sm:$0xf]
    %v67 = vld [vmem:[#allocation5 + $0x1c] sm:$0xf]
    %v68 = vld [vmem:[#allocation5 + $0x20] sm:$0xf]
    %v69 = vld [vmem:[#allocation5 + $0x24] sm:$0xf]
    %v70 = vld [vmem:[#allocation5 + $0x28] sm:$0xf]
    %v71 = vld [vmem:[#allocation5 + $0x2c] sm:$0xf]
    %v72 = vld [vmem:[#allocation5 + $0x30] sm:$0xf]
    %v73 = vld [vmem:[#allocation5 + $0x34] sm:$0xf]
    %v74 = vld [vmem:[#allocation5 + $0x38] sm:$0xf]
    %v75 = vld [vmem:[#allocation5 + $0x3c] sm:$0xf]
    %v92 = vunpack.c.l.b16 %v44
    %v93 = vunpack.c.l.b16 %v45
    %v94 = vunpack.c.l.b16 %v46
    %v95 = vunpack.c.l.b16 %v47
    %v96 = vunpack.c.l.b16 %v48
    %v97 = vunpack.c.l.b16 %v49
    %v98 = vunpack.c.l.b16 %v50
    %v99 = vunpack.c.l.b16 %v51
    %v100 = vunpack.c.l.b16 %v52
    %v101 = vunpack.c.l.b16 %v53
    %v102 = vunpack.c.l.b16 %v54
    %v103 = vunpack.c.l.b16 %v55
    %v104 = vunpack.c.l.b16 %v56
    %v105 = vunpack.c.l.b16 %v57
    %v106 = vunpack.c.l.b16 %v58
    %v107 = vunpack.c.l.b16 %v59
    %v108 = vpack.c.b16 %v93, %v92
    %v109 = vpack.c.b16 %v95, %v94
    %v110 = vpack.c.b16 %v97, %v96
    %v111 = vpack.c.b16 %v99, %v98
    %v112 = vpack.c.b16 %v101, %v100
    %v113 = vpack.c.b16 %v103, %v102
    %v114 = vpack.c.b16 %v105, %v104
    %v115 = vpack.c.b16 %v107, %v106
    %v140 = vunpack.c.l.b16 %v60
    %v141 = vunpack.c.l.b16 %v61
    %v142 = vunpack.c.l.b16 %v62
    %v143 = vunpack.c.l.b16 %v63
    %v144 = vunpack.c.l.b16 %v64
    %v145 = vunpack.c.l.b16 %v65
    %v146 = vunpack.c.l.b16 %v66
    %v147 = vunpack.c.l.b16 %v67
    %v148 = vunpack.c.l.b16 %v68
    %v149 = vunpack.c.l.b16 %v69
    %v150 = vunpack.c.l.b16 %v70
    %v151 = vunpack.c.l.b16 %v71
    %v152 = vunpack.c.l.b16 %v72
    %v153 = vunpack.c.l.b16 %v73
    %v154 = vunpack.c.l.b16 %v74
    %v155 = vunpack.c.l.b16 %v75
    %v156 = vpack.c.b16 %v141, %v140
    %v157 = vpack.c.b16 %v143, %v142
    %v158 = vpack.c.b16 %v145, %v144
    %v159 = vpack.c.b16 %v147, %v146
    %v160 = vpack.c.b16 %v149, %v148
    %v161 = vpack.c.b16 %v151, %v150
    %v162 = vpack.c.b16 %v153, %v152
    %v163 = vpack.c.b16 %v155, %v154
    %172 = vmatpush.bf16.msra.mxu0 %v163
    %173 = vmatpush.bf16.msra.mxu0 %v162
    %174 = vmatpush.bf16.msra.mxu0 %v161
    %175 = vmatpush.bf16.msra.mxu0 %v160
    %176 = vmatpush.bf16.msra.mxu0 %v159
    %177 = vmatpush.bf16.msra.mxu0 %v158
    %178 = vmatpush.bf16.msra.mxu0 %v157
    %179 = vmatpush.bf16.msra.mxu0 %v156
    %180 = vmatmul.bf16.gmra.mxu0 %v108
    %v181 = vpop.f32.mrf.mxu0
    %v182 = vadd.f32 0.0, %v181
    %v183 = vpop.f32.mrf.mxu0
    %v184 = vadd.f32 0.0, %v183
    %185 = vmatmul.bf16.gmra.mxu0 %v109
    %v186 = vpop.f32.mrf.mxu0
    %v187 = vadd.f32 0.0, %v186
    %v188 = vpop.f32.mrf.mxu0
    %v189 = vadd.f32 0.0, %v188
    %190 = vmatmul.bf16.gmra.mxu0 %v110
    %v191 = vpop.f32.mrf.mxu0
    %v192 = vadd.f32 0.0, %v191
    %v193 = vpop.f32.mrf.mxu0
    %v194 = vadd.f32 0.0, %v193
    %195 = vmatmul.bf16.gmra.mxu0 %v111
    %v196 = vpop.f32.mrf.mxu0
    %v197 = vadd.f32 0.0, %v196
    %v198 = vpop.f32.mrf.mxu0
    %v199 = vadd.f32 0.0, %v198
    %200 = vmatmul.bf16.gmra.mxu0 %v112
    %v201 = vpop.f32.mrf.mxu0
    %v202 = vadd.f32 0.0, %v201
    %v203 = vpop.f32.mrf.mxu0
    %v204 = vadd.f32 0.0, %v203
    %205 = vmatmul.bf16.gmra.mxu0 %v113
    %v206 = vpop.f32.mrf.mxu0
    %v207 = vadd.f32 0.0, %v206
    %v208 = vpop.f32.mrf.mxu0
    %v209 = vadd.f32 0.0, %v208
    %210 = vmatmul.bf16.gmra.mxu0 %v114
    %v211 = vpop.f32.mrf.mxu0
    %v212 = vadd.f32 0.0, %v211
    %v213 = vpop.f32.mrf.mxu0
    %v214 = vadd.f32 0.0, %v213
    %215 = vmatmul.bf16.gmra.mxu0 %v115
    %v216 = vpop.f32.mrf.mxu0
    %v217 = vadd.f32 0.0, %v216
    %v218 = vpop.f32.mrf.mxu0
    %v219 = vadd.f32 0.0, %v218
    %220 = vdwg.mxu0
    %v221 = vpack.c.bf16 %v182, %v182
    %v222 = vpack.c.bf16 %v184, %v184
    %v223 = vpack.c.bf16 %v187, %v187
    %v224 = vpack.c.bf16 %v189, %v189
    %v225 = vpack.c.bf16 %v192, %v192
    %v226 = vpack.c.bf16 %v194, %v194
    %v227 = vpack.c.bf16 %v197, %v197
    %v228 = vpack.c.bf16 %v199, %v199
    %v229 = vpack.c.bf16 %v202, %v202
    %v230 = vpack.c.bf16 %v204, %v204
    %v231 = vpack.c.bf16 %v207, %v207
    %v232 = vpack.c.bf16 %v209, %v209
    %v233 = vpack.c.bf16 %v212, %v212
    %v234 = vpack.c.bf16 %v214, %v214
    %v235 = vpack.c.bf16 %v217, %v217
    %v236 = vpack.c.bf16 %v219, %v219
    %237 = vst [vmem:[#allocation7] sm:$0xf] %v221
    %238 = vst [vmem:[#allocation7 + $0x4] sm:$0xf] %v222
    %239 = vst [vmem:[#allocation7 + $0x8] sm:$0xf] %v223
    %240 = vst [vmem:[#allocation7 + $0xc] sm:$0xf] %v224
    %241 = vst [vmem:[#allocation7 + $0x10] sm:$0xf] %v225
    %242 = vst [vmem:[#allocation7 + $0x14] sm:$0xf] %v226
    %243 = vst [vmem:[#allocation7 + $0x18] sm:$0xf] %v227
    %244 = vst [vmem:[#allocation7 + $0x1c] sm:$0xf] %v228
    %245 = vst [vmem:[#allocation7 + $0x20] sm:$0xf] %v229
    %246 = vst [vmem:[#allocation7 + $0x24] sm:$0xf] %v230
    %247 = vst [vmem:[#allocation7 + $0x28] sm:$0xf] %v231
    %248 = vst [vmem:[#allocation7 + $0x2c] sm:$0xf] %v232
    %249 = vst [vmem:[#allocation7 + $0x30] sm:$0xf] %v233
    %250 = vst [vmem:[#allocation7 + $0x34] sm:$0xf] %v234
    %251 = vst [vmem:[#allocation7 + $0x38] sm:$0xf] %v235
    %252 = vst [vmem:[#allocation7 + $0x3c] sm:$0xf] %v236
    // Predicated region
    $region18: #{tpu_custom_call.1} parent=1 // pred_check
      _
    $region19: #{tpu_custom_call.1} parent=1 // pred_check_branch
      %254 = sbr.rel (0) target = $region21
    $region20: #{tpu_custom_call.1} parent=1 // pred_region
      %256 = vsyncadd [#allocation4], 0
      %s257 = sshll.u32 [#allocation7], 4
      %s258 = int_to_ptr.vmem [resolvable:$true] %s257
      %s259 = sshll.u32 %s2, 4
      %s260 = int_to_ptr.hbm [resolvable:$true] %s259
      %265 = dma.vmem_to_hbm [thread:$0]  %s258, 1024, %s260, [#allocation4], 64, 64, 4
    $region21: #{tpu_custom_call.1} parent=1 // pred_fallthru
      _
    // Predicated region
    $region22: #{tpu_custom_call.1} parent=1 // pred_check
      _
    $region23: #{tpu_custom_call.1} parent=1 // pred_check_branch
      %267 = sbr.rel (0) target = $region25
    $region24: #{tpu_custom_call.1} parent=1 // pred_region
      %269 = dma.done [#allocation4], 1024
    $region25: #{tpu_custom_call.1} parent=1 // pred_fallthru
      _
    %270 = vsyncpa [#allocation3], 1
    %271 = vsyncpa [#allocation6], 1
    %272 = vsyncpa [#allocation4], 1

</llo_original>
